<compile_context>
chip_gen: v7x
topology: tpu7x:2x2x1
jax: 0.10.0
libtpu: 0.0.40
codegen_flags: <defaults>
</compile_context>

<pallas_src>
import jax
import jax.numpy as jnp
from jax.experimental import pallas as pl
from jax.experimental.pallas import tpu as pltpu


def ce_head_kernel(xn_ref, wt_ref, o_ref):
    # xn tile: (tm, K) compute_dtype (already row-normalized)
    # wt tile: (K, tn) compute_dtype (already weight_norm'd, == W_eff^T panel)
    # out tile: (tm, tn) out_dtype
    o_ref[...] = jnp.dot(
        xn_ref[...], wt_ref[...], preferred_element_type=jnp.float32
    ).astype(o_ref.dtype)


def ce_head_forward(
    x,
    v,
    g,
    *,
    compute_dtype=jnp.bfloat16,
    out_dtype=jnp.float32,
    tm_cap=256,
    tn_cap=2048,
):
    """x: [M, K], v: [out_dim, in_dim] (torch weight_v layout), g: [out_dim]."""
    M, K = x.shape
    N, Kv = v.shape
    assert Kv == K

    # ---- hoisted x row-normalization (f32 math, single fused pass) ----------
    x_f32 = x.astype(jnp.float32)
    row_scale = jax.lax.rsqrt(
        jnp.maximum(jnp.sum(x_f32 * x_f32, axis=-1, keepdims=True), 1e-24)
    )  # == 1 / max(||x||, 1e-12)
    xn = (x_f32 * row_scale).astype(compute_dtype)  # [M, K]

    # ---- hoisted weight_norm folded into the weight panel (single pass) -----
    # NOTE: no eps clamp on ||V|| — an all-zero V row NaNs exactly like
    # PyTorch's weight_norm would.
    v_f32 = v.astype(jnp.float32)
    col_scale = g.astype(jnp.float32)[:, None] * jax.lax.rsqrt(
        jnp.sum(v_f32 * v_f32, axis=-1, keepdims=True)
    )  # [N, 1]
    wt = jnp.transpose(v_f32 * col_scale).astype(compute_dtype)  # [K, N] == W_eff^T

    # ---- tile selection: full extent when small, else large aligned tiles ---
    tm = M if M <= tm_cap else tm_cap  # tm_cap multiple of 8
    tn = N if N <= tn_cap else tn_cap  # tn_cap multiple of 128
    gm = pl.cdiv(M, tm)
    gn = pl.cdiv(N, tn)

    cd_bytes = jnp.dtype(compute_dtype).itemsize
    od_bytes = jnp.dtype(out_dtype).itemsize

    # ---- adaptive grid order (minimize re-read HBM traffic) -----------------
    # weight-major: V^T streamed once, x re-read (gn-1) extra times.
    # x-major:      x streamed once, V^T re-read (gm-1) extra times.
    x_bytes = M * K * cd_bytes
    w_bytes = K * N * cd_bytes
    weight_major = x_bytes * (gn - 1) <= w_bytes * (gm - 1) or (gm == 1 and gn == 1)

    if weight_major:
        grid = (gn, gm)
        xn_spec = pl.BlockSpec((tm, K), lambda j, i: (i, 0))
        wt_spec = pl.BlockSpec((K, tn), lambda j, i: (0, j))
        out_spec = pl.BlockSpec((tm, tn), lambda j, i: (i, j))
    else:
        grid = (gm, gn)
        xn_spec = pl.BlockSpec((tm, K), lambda i, j: (i, 0))
        wt_spec = pl.BlockSpec((K, tn), lambda i, j: (0, j))
        out_spec = pl.BlockSpec((tm, tn), lambda i, j: (i, j))

    # ---- VMEM budget: double-buffered working set + headroom, v7x-safe ------
    working = 2 * (tm * K * cd_bytes + K * tn * cd_bytes + tm * tn * od_bytes)
    vmem_limit = int(min(max(2 * working, 16 * (1 << 20)), 48 * (1 << 20)))

    cost = pl.CostEstimate(
        flops=2 * M * K * N,
        transcendentals=0,
        bytes_accessed=M * K * cd_bytes + K * N * cd_bytes + M * N * od_bytes,
    )

    return pl.pallas_call(
        ce_head_kernel,
        out_shape=jax.ShapeDtypeStruct((M, N), out_dtype),
        grid_spec=pltpu.PrefetchScalarGridSpec(
            num_scalar_prefetch=0,
            grid=grid,
            in_specs=[xn_spec, wt_spec],
            out_specs=out_spec,
        ),
        compiler_params=pltpu.CompilerParams(
            dimension_semantics=("parallel", "parallel"),
            vmem_limit_bytes=vmem_limit,
        ),
        cost_estimate=cost,
    )(xn, wt)


if __name__ == "__main__":
    # Small shapes consistent with the module tail: in_dim=32, out_dim=256.
    batch, in_dim, out_dim = 16, 32, 256

    key = jax.random.PRNGKey(0)
    kx, kv = jax.random.split(key)
    x = jax.random.normal(kx, (batch, in_dim), dtype=jnp.float32)
    # weight_norm direction tensor V (synthetic trunc-normal init, std ~0.02)
    v = 0.02 * jax.random.truncated_normal(
        kv, -2.0, 2.0, (out_dim, in_dim), dtype=jnp.float32
    )
    # weight_g filled with 1 in __init__ (norm_last_layer=True -> frozen at 1)
    g = jnp.ones((out_dim,), dtype=jnp.float32)

    # Pure-JAX reference.
    x_n = x / jnp.maximum(
        jnp.sqrt(jnp.sum(x * x, axis=-1, keepdims=True)), 1e-12
    )
    w_eff = g[:, None] * v / jnp.sqrt(jnp.sum(v * v, axis=-1, keepdims=True))
    ref = x_n @ w_eff.T

    # f32 MXU path: tight tolerance (same operand ordering as the reference).
    logits_f32 = ce_head_forward(x, v, g, compute_dtype=jnp.float32)
    jax.block_until_ready(logits_f32)
    assert jnp.allclose(logits_f32, ref, atol=1e-5, rtol=1e-5)

    # bf16 MXU path (production perf configuration): relaxed tolerance.
    logits_bf16 = ce_head_forward(x, v, g, compute_dtype=jnp.bfloat16)
    jax.block_until_ready(logits_bf16)
    assert jnp.allclose(logits_bf16, ref, atol=2e-2, rtol=2e-2)

    # bf16 logits path (halves the dominant output HBM stream for big-vocab).
    logits_bf16_out = ce_head_forward(
        x, v, g, compute_dtype=jnp.bfloat16, out_dtype=jnp.bfloat16
    )
    jax.block_until_ready(logits_bf16_out)
    assert jnp.allclose(
        logits_bf16_out.astype(jnp.float32), ref, atol=2e-2, rtol=2e-2
    )

    print("KERNEL_OK")
</pallas_src>

<mosaic_0001>
module attributes {stable_mosaic.version = 11 : i64} {
  func.func @ce_head_kernel(%arg0: i32, %arg1: i32, %arg2: memref<16x32xf32, #tpu.memory_space<vmem>>, %arg3: memref<32x256xf32, #tpu.memory_space<vmem>>, %arg4: memref<16x256xf32, #tpu.memory_space<vmem>>) attributes {dimension_semantics = [#tpu.dimension_semantics<parallel>, #tpu.dimension_semantics<parallel>], iteration_bounds = array<i64: 1, 1>, scalar_prefetch = 0 : i64, scratch_operands = 0 : i64, tpu.core_type = #tpu.core_type<tc>, window_params = [{transform_indices = @transform_0, window_bounds = array<i64: 16, 32>}, {transform_indices = @transform_1, window_bounds = array<i64: 32, 256>}, {transform_indices = @transform_2, window_bounds = array<i64: 16, 256>}]} {
    %c0 = arith.constant 0 : index
    %c0_0 = arith.constant 0 : index
    %0 = vector.load %arg2[%c0, %c0_0] : memref<16x32xf32, #tpu.memory_space<vmem>>, vector<16x32xf32>
    %c0_1 = arith.constant 0 : index
    %c0_2 = arith.constant 0 : index
    %1 = vector.load %arg3[%c0_1, %c0_2] : memref<32x256xf32, #tpu.memory_space<vmem>>, vector<32x256xf32>
    %cst = arith.constant dense<0.000000e+00> : vector<16x256xf32>
    %2 = tpu.matmul %0, %1, %cst {dimension_numbers = #tpu.dot_dimension_numbers<[1], [0], [0], [1], [0, 0, 1, 1], [], []>} : vector<16x32xf32>, vector<32x256xf32>, vector<16x256xf32> -> vector<16x256xf32>
    %c0_3 = arith.constant 0 : index
    %c0_4 = arith.constant 0 : index
    %3 = vector.load %arg4[%c0_3, %c0_4] : memref<16x256xf32, #tpu.memory_space<vmem>>, vector<16x256xf32>
    tpu.vector_store %arg4[%c0_3, %c0_4], %2 {strides = array<i32>} : memref<16x256xf32, #tpu.memory_space<vmem>>, vector<16x256xf32>,
    return
  }
  func.func @transform_0(%arg0: i32, %arg1: i32) -> (i32, i32) {
    %c0_i32 = arith.constant 0 : i32
    %c0_i32_0 = arith.constant 0 : i32
    return %arg1, %c0_i32 : i32, i32
  }
  func.func @transform_1(%arg0: i32, %arg1: i32) -> (i32, i32) {
    %c0_i32 = arith.constant 0 : i32
    %c0_i32_0 = arith.constant 0 : i32
    return %c0_i32, %arg0 : i32, i32
  }
  func.func @transform_2(%arg0: i32, %arg1: i32) -> (i32, i32) {
    %c0_i32 = arith.constant 0 : i32
    return %arg1, %arg0 : i32, i32
  }
}

</mosaic_0001>

<llo_original>
// kernel: tpu_custom_call.1
$region0: #{tpu_custom_call.1}
  #allocation0 [shape = 'u32[]', space=smem, size = 0x4, offset = 0x4, fixed_abs, tag = 'smem constant byte address 0x4 - core index']
  #allocation1 [shape = 'u32[144,128]{1,0:T(1,128)}', space=vmem, size = 0x12000, scoped, tag = 'internal scratch']
  %s0 = inlined_call_operand.hbm [shape: f32[16,32], index: 0, kind: input, shape index: {}]
  %s1 = inlined_call_operand.hbm [shape: f32[32,256], index: 1, kind: input, shape index: {}]
  %s2 = inlined_call_operand.hbm [shape: f32[16,256], index: 2, kind: output, shape index: {}]
  %s3 = sld [smem:[#allocation0]]
  $region26: #{tpu_custom_call.1} parent=0
    _
  %s5 = ssub.s32 1, %s3
  %s6 = scalar_select 0, %s5, %s3
  $region1: #{tpu_custom_call.1} parent=0
    #allocation2 [shape = 'u8[8192]{0}', space=vmem, size = 0x2000, scoped, tag = 'input window, operand 0, single buffered']
    #allocation3 [shape = 's32[1]{0}', space=sflag, size = 0x4, scoped, tag = 'scoped memory for tpu_custom_call.1']
    #allocation4 [shape = 's32[1]{0}', space=sflag, size = 0x4, scoped, tag = 'scoped memory for tpu_custom_call.1']
    #allocation5 [shape = 'u8[32768]{0}', space=vmem, size = 0x8000, scoped, tag = 'input window, operand 1, single buffered']
    #allocation6 [shape = 's32[1]{0}', space=sflag, size = 0x4, scoped, tag = 'scoped memory for tpu_custom_call.1']
    #allocation7 [shape = 'u8[16384]{0}', space=vmem, size = 0x4000, scoped, tag = 'output window, operand 0, single buffered']
    %7 = vsyncpa [#allocation3], 0
    %8 = vsyncpa [#allocation6], 0
    %9 = vsyncpa [#allocation4], 0
    // Predicated region
    $region2: #{tpu_custom_call.1} parent=1 // pred_check
      _
    $region3: #{tpu_custom_call.1} parent=1 // pred_check_branch
      %11 = sbr.rel (0) target = $region5
    $region4: #{tpu_custom_call.1} parent=1 // pred_region
      %s13 = ssub.s32 256, 256
      %14 = vsyncadd [#allocation3], %s13
      %s15 = sshll.u32 [#allocation2], 4
      %s16 = int_to_ptr.vmem [resolvable:$true] %s15
      %21 = dma.hbm_to_vmem [thread:$0]  %s0, 256, %s16, [#allocation3], 128, 128, 8
    $region5: #{tpu_custom_call.1} parent=1 // pred_fallthru
      _
    // Predicated region
    $region6: #{tpu_custom_call.1} parent=1 // pred_check
      _
    $region7: #{tpu_custom_call.1} parent=1 // pred_check_branch
      %23 = sbr.rel (0) target = $region9
    $region8: #{tpu_custom_call.1} parent=1 // pred_region
      %s25 = ssub.s32 1024, 1024
      %26 = vsyncadd [#allocation6], %s25
      %s27 = sshll.u32 [#allocation5], 4
      %s28 = int_to_ptr.vmem [resolvable:$true] %s27
      %33 = dma.hbm_to_vmem [thread:$0]  %s1, 1024, %s28, [#allocation6], 256, 256, 16
    $region9: #{tpu_custom_call.1} parent=1 // pred_fallthru
      _
    // Predicated region
    $region10: #{tpu_custom_call.1} parent=1 // pred_check
      _
    $region11: #{tpu_custom_call.1} parent=1 // pred_check_branch
      %35 = sbr.rel (0) target = $region13
    $region12: #{tpu_custom_call.1} parent=1 // pred_region
      %36 = dma.done [#allocation3], 256
    $region13: #{tpu_custom_call.1} parent=1 // pred_fallthru
      _
    // Predicated region
    $region14: #{tpu_custom_call.1} parent=1 // pred_check
      _
    $region15: #{tpu_custom_call.1} parent=1 // pred_check_branch
      %38 = sbr.rel (0) target = $region17
    $region16: #{tpu_custom_call.1} parent=1 // pred_region
      %39 = dma.done [#allocation6], 1024
    $region17: #{tpu_custom_call.1} parent=1 // pred_fallthru
      _
    %v40 = vld [vmem:[#allocation2] sm:$0xff]
    %v41 = vld [vmem:[#allocation2 + $0x8] sm:$0xff]
    %v42 = vld [vmem:[#allocation5] sm:$0xff]
    %v43 = vld [vmem:[#allocation5 + $0x8] sm:$0xff]
    %v44 = vld [vmem:[#allocation5 + $0x10] sm:$0xff]
    %v45 = vld [vmem:[#allocation5 + $0x18] sm:$0xff]
    %v46 = vld [vmem:[#allocation5 + $0x20] sm:$0xff]
    %v47 = vld [vmem:[#allocation5 + $0x28] sm:$0xff]
    %v48 = vld [vmem:[#allocation5 + $0x30] sm:$0xff]
    %v49 = vld [vmem:[#allocation5 + $0x38] sm:$0xff]
    %vm50 = vcmask 261120
    %v52 = vsel %vm50, %v40, 0
    %v55 = vsel %vm50, %v41, 0
    %57 = vmatprep.subr.mxu0 %v43
    %58 = vmatpush1.msra.mxu0 %v42
    %59 = vmatprep.subr.mxu0 %v45
    %60 = vmatpush1.msra.mxu0 %v44
    %61 = vmatprep.subr.mxu0 %v47
    %62 = vmatpush1.msra.mxu0 %v46
    %63 = vmatprep.subr.mxu0 %v49
    %64 = vmatpush1.msra.mxu0 %v48
    %65 = vmatprep.subr.mxu0 0.0
    %66 = vmatpush1.msra.mxu0 0.0
    %67 = vmatprep.subr.mxu0 0.0
    %68 = vmatpush1.msra.mxu0 0.0
    %69 = vmatprep.subr.mxu0 0.0
    %70 = vmatpush1.msra.mxu0 0.0
    %71 = vmatprep.subr.mxu0 0.0
    %72 = vmatpush1.msra.mxu0 0.0
    %73 = vmatprep.subr.mxu0 0.0
    %74 = vmatpush1.msra.mxu0 0.0
    %75 = vmatprep.subr.mxu0 0.0
    %76 = vmatpush1.msra.mxu0 0.0
    %77 = vmatprep.subr.mxu0 0.0
    %78 = vmatpush1.msra.mxu0 0.0
    %79 = vmatprep.subr.mxu0 0.0
    %80 = vmatpush1.msra.mxu0 0.0
    %81 = vmatprep.subr.mxu0 0.0
    %82 = vmatpush1.msra.mxu0 0.0
    %83 = vmatprep.subr.mxu0 0.0
    %84 = vmatpush1.msra.mxu0 0.0
    %85 = vmatprep.subr.mxu0 0.0
    %86 = vmatpush1.msra.mxu0 0.0
    %87 = vmatprep.subr.mxu0 0.0
    %88 = vmatpush1.msra.mxu0 0.0
    %89 = vmatprep.subr.mxu0 0.0
    %90 = vmatpush1.msra.mxu0 0.0
    %91 = vmatprep.subr.mxu0 0.0
    %92 = vmatpush1.msra.mxu0 0.0
    %93 = vmatprep.subr.mxu0 0.0
    %94 = vmatpush1.msra.mxu0 0.0
    %95 = vmatprep.subr.mxu0 0.0
    %96 = vmatpush1.msra.mxu0 0.0
    %97 = vmatprep.subr.mxu0 0.0
    %98 = vmatpush1.msra.mxu0 0.0
    %99 = vmatprep.subr.mxu0 0.0
    %100 = vmatpush1.msra.mxu0 0.0
    %101 = vmatprep.subr.mxu0 0.0
    %102 = vmatpush1.msra.mxu0 0.0
    %103 = vmatprep.subr.mxu0 0.0
    %104 = vmatpush1.msra.mxu0 0.0
    %105 = vmatprep.subr.mxu0 0.0
    %106 = vmatpush1.msra.mxu0 0.0
    %107 = vmatprep.subr.mxu0 0.0
    %108 = vmatpush1.msra.mxu0 0.0
    %109 = vmatprep.subr.mxu0 0.0
    %110 = vmatpush1.msra.mxu0 0.0
    %111 = vmatprep.subr.mxu0 0.0
    %112 = vmatpush1.msra.mxu0 0.0
    %113 = vmatprep.subr.mxu0 0.0
    %114 = vmatpush1.msra.mxu0 0.0
    %115 = vmatprep.subr.mxu0 0.0
    %116 = vmatpush1.msra.mxu0 0.0
    %117 = vmatprep.subr.mxu0 0.0
    %118 = vmatpush1.msra.mxu0 0.0
    %119 = vmatprep.subr.mxu0 0.0
    %120 = vmatpush1.msra.mxu0 0.0
    %121 = vmatprep.mubr.f32.mxu0 0.0
    %122 = vmatmul.mubr.f32.gmra.mrb[0].mxu0 %v52
    %v123 = vpop.f32.mrb[0].mxu0
    %v124 = vadd.f32 0.0, %v123
    %v125 = vpop.f32.mrb[0].mxu0
    %v126 = vadd.f32 0.0, %v125
    %127 = vmatprep.mubr.f32.mxu0 0.0
    %128 = vmatmul.mubr.f32.gmra.mrb[0].mxu0 %v55
    %v129 = vpop.f32.mrb[0].mxu0
    %v130 = vadd.f32 0.0, %v129
    %v131 = vpop.f32.mrb[0].mxu0
    %v132 = vadd.f32 0.0, %v131
    %133 = vdwg.mxu0
    %134 = vst [vmem:[#allocation7] sm:$0xff] %v124
    %135 = vst [vmem:[#allocation7 + $0x8] sm:$0xff] %v126
    %136 = vst [vmem:[#allocation7 + $0x10] sm:$0xff] %v130
    %137 = vst [vmem:[#allocation7 + $0x18] sm:$0xff] %v132
    // Predicated region
    $region18: #{tpu_custom_call.1} parent=1 // pred_check
      _
    $region19: #{tpu_custom_call.1} parent=1 // pred_check_branch
      %139 = sbr.rel (0) target = $region21
    $region20: #{tpu_custom_call.1} parent=1 // pred_region
      %s141 = ssub.s32 512, 512
      %142 = vsyncadd [#allocation4], %s141
      %s143 = sshll.u32 [#allocation7], 4
      %s144 = int_to_ptr.vmem [resolvable:$true] %s143
      %149 = dma.vmem_to_hbm [thread:$0]  %s144, 512, %s2, [#allocation4], 256, 256, 16
    $region21: #{tpu_custom_call.1} parent=1 // pred_fallthru
      _
    // Predicated region
    $region22: #{tpu_custom_call.1} parent=1 // pred_check
      _
    $region23: #{tpu_custom_call.1} parent=1 // pred_check_branch
      %151 = sbr.rel (0) target = $region25
    $region24: #{tpu_custom_call.1} parent=1 // pred_region
      %152 = dma.done [#allocation4], 512
    $region25: #{tpu_custom_call.1} parent=1 // pred_fallthru
      _
    %153 = vsyncpa [#allocation3], 1
    %154 = vsyncpa [#allocation6], 1
    %155 = vsyncpa [#allocation4], 1

</llo_original>
